<compile_context>
chip_gen: v6e
topology: v6e:2x2x1
jax: 0.10.0
libtpu: 0.0.40
codegen_flags: <defaults>
</compile_context>

<pallas_src>
import jax
import jax.numpy as jnp
from jax.experimental import pallas as pl
from jax.experimental.pallas import tpu as pltpu


def _column_layer_kernel(x_ref, w_ref, b_ref, out_ref):
    """Fused (concatenated-K) linear + folded bias + ReLU.

    x_ref:   [tm, K_total]   activation tile (x ++ prev_outputs)
    w_ref:   [K_total, tn]   weight tile (W_main ++ W_adapters), VMEM-resident
    b_ref:   [1, tn]         folded bias
    out_ref: [tm, tn]
    """
    acc = jnp.dot(x_ref[...], w_ref[...], preferred_element_type=jnp.float32)
    acc = acc + b_ref[...].astype(jnp.float32)
    # activation = nn.ReLU(); epilogue stays in f32 (v5e-friendly), cast on store.
    out_ref[...] = jnp.maximum(acc, 0.0).astype(out_ref.dtype)


def _round_up(x, m):
    return ((x + m - 1) // m) * m


def column_layer_forward(x, w_main, b_main, prev_outputs=None, adapters=None,
                         lateral_connections=True, block_m=256, block_n=256,
                         compute_dtype=None):
    """Pallas wrapper mirroring ColumnLayer.forward.

    x:            [B, in_features]
    w_main:       [in_features, out_features]   (transposed vs. torch Linear)
    b_main:       [out_features]
    prev_outputs: list of [B, prev_out_i]
    adapters:     list of (W_i [prev_out_i, out_features], b_i [out_features])
    compute_dtype: optional dtype (e.g. jnp.bfloat16 on v6e/v7x) for the matmul
                   operands; accumulation stays f32.
    """
    prev_outputs = list(prev_outputs or [])
    adapters = list(adapters or [])
    num_adapters = 0
    if prev_outputs and lateral_connections:
        # torch loop only uses prev_outputs[i] when i < len(self.adapters)
        num_adapters = min(len(prev_outputs), len(adapters))

    # ---- Static prep: fuse K axis, fold biases (done once in the wrapper). ----
    if num_adapters:
        x_cat = jnp.concatenate([x] + prev_outputs[:num_adapters], axis=1)
        w_cat = jnp.concatenate(
            [w_main] + [adapters[i][0] for i in range(num_adapters)], axis=0)
        b_total = b_main
        for i in range(num_adapters):
            b_total = b_total + adapters[i][1]
    else:
        x_cat, w_cat, b_total = x, w_main, b_main

    if compute_dtype is not None:
        x_cat = x_cat.astype(compute_dtype)
        w_cat = w_cat.astype(compute_dtype)

    B, K = x_cat.shape
    N = w_cat.shape[1]
    out_dtype = x.dtype

    # ---- Tile selection: lane-dense (multiple-of-128) N, 8-aligned M. ----
    tn = min(block_n, _round_up(N, 128))
    Np = _round_up(N, tn)
    tm = min(block_m, _round_up(B, 8))
    Bp = _round_up(B, tm)

    if Np != N:
        w_cat = jnp.pad(w_cat, ((0, 0), (0, Np - N)))
        b_total = jnp.pad(b_total, (0, Np - N))
    if Bp != B:
        x_cat = jnp.pad(x_cat, ((0, Bp - B), (0, 0)))
    b2 = b_total.reshape(1, Np)

    grid = (Bp // tm, Np // tn)

    itemsize = jnp.dtype(out_dtype).itemsize
    cost = pl.CostEstimate(
        flops=2 * Bp * K * Np,
        transcendentals=0,
        bytes_accessed=(x_cat.size * x_cat.dtype.itemsize
                        + w_cat.size * w_cat.dtype.itemsize
                        + b2.size * b2.dtype.itemsize
                        + Bp * Np * itemsize),
    )

    out = pl.pallas_call(
        _column_layer_kernel,
        out_shape=jax.ShapeDtypeStruct((Bp, Np), out_dtype),
        grid=grid,
        in_specs=[
            # Activations stream over batch tiles; K kept whole (full extent).
            pl.BlockSpec((tm, K), lambda i, j: (i, 0)),
            # Weights/bias: constant batch index -> VMEM-resident across batch tiles.
            pl.BlockSpec((K, tn), lambda i, j: (0, j)),
            pl.BlockSpec((1, tn), lambda i, j: (0, j)),
        ],
        out_specs=pl.BlockSpec((tm, tn), lambda i, j: (i, j)),
        compiler_params=pltpu.CompilerParams(
            dimension_semantics=("parallel", "parallel")),
        cost_estimate=cost,
    )(x_cat, w_cat, b2)

    # Slice off lane/batch padding.
    return out[:B, :N]


def _init_linear(key, fan_in, fan_out, dtype=jnp.float32):
    """Deterministic init mimicking torch.nn.Linear default (uniform +-1/sqrt(fan_in)).

    Returns weight with shape [fan_in, fan_out] (already transposed for x @ W).
    """
    kw, kb = jax.random.split(key)
    bound = 1.0 / jnp.sqrt(jnp.asarray(fan_in, dtype))
    w = jax.random.uniform(kw, (fan_in, fan_out), dtype, -bound, bound)
    b = jax.random.uniform(kb, (fan_out,), dtype, -bound, bound)
    return w, b


def _reference_forward(x, w_main, b_main, prev_outputs, adapters):
    out = x @ w_main + b_main
    for i, p in enumerate(prev_outputs):
        if i < len(adapters):
            wa, ba = adapters[i]
            out = out + p @ wa + ba
    return jnp.maximum(out, 0.0)


if __name__ == "__main__":
    key = jax.random.PRNGKey(0)
    k_x, k_main, k_a0, k_a1, k_p0, k_p1 = jax.random.split(key, 6)

    batch = 8
    in_features = 32
    out_features = 64
    prev_dims = [16, 48]   # out_features of two previous-column layers

    x = jax.random.normal(k_x, (batch, in_features), jnp.float32)

    # Main linear parameters.
    w_main, b_main = _init_linear(k_main, in_features, out_features)

    # Lateral adapter parameters (one per previous column layer).
    adapters = [
        _init_linear(k_a0, prev_dims[0], out_features),
        _init_linear(k_a1, prev_dims[1], out_features),
    ]

    # Outputs from previous column layers (post-activation, so >= 0, but the
    # kernel does not rely on that).
    prev_outputs = [
        jax.nn.relu(jax.random.normal(k_p0, (batch, prev_dims[0]), jnp.float32)),
        jax.nn.relu(jax.random.normal(k_p1, (batch, prev_dims[1]), jnp.float32)),
    ]

    # With lateral connections.
    out = column_layer_forward(x, w_main, b_main, prev_outputs, adapters)
    out = jax.block_until_ready(out)
    ref = _reference_forward(x, w_main, b_main, prev_outputs, adapters)
    assert out.shape == (batch, out_features)
    assert jnp.allclose(out, ref, atol=1e-5, rtol=1e-5), "mismatch vs reference"

    # Without lateral connections (first column / no prev outputs).
    out0 = column_layer_forward(x, w_main, b_main)
    out0 = jax.block_until_ready(out0)
    ref0 = _reference_forward(x, w_main, b_main, [], [])
    assert jnp.allclose(out0, ref0, atol=1e-5, rtol=1e-5), "mismatch (no laterals)"

    print("KERNEL_OK")
</pallas_src>

<mosaic_0001>
module attributes {stable_mosaic.version = 11 : i64} {
  func.func @_column_layer_kernel(%arg0: i32, %arg1: i32, %arg2: memref<8x96xf32, #tpu.memory_space<vmem>>, %arg3: memref<96x128xf32, #tpu.memory_space<vmem>>, %arg4: memref<1x128xf32, #tpu.memory_space<vmem>>, %arg5: memref<8x128xf32, #tpu.memory_space<vmem>>) attributes {dimension_semantics = [#tpu.dimension_semantics<parallel>, #tpu.dimension_semantics<parallel>], iteration_bounds = array<i64: 1, 1>, scalar_prefetch = 0 : i64, scratch_operands = 0 : i64, tpu.core_type = #tpu.core_type<tc>, window_params = [{transform_indices = @transform_0, window_bounds = array<i64: 8, 96>}, {transform_indices = @transform_1, window_bounds = array<i64: 96, 128>}, {transform_indices = @transform_2, window_bounds = array<i64: 1, 128>}, {transform_indices = @transform_3, window_bounds = array<i64: 8, 128>}]} {
    %c0 = arith.constant 0 : index
    %c0_0 = arith.constant 0 : index
    %0 = vector.load %arg2[%c0, %c0_0] : memref<8x96xf32, #tpu.memory_space<vmem>>, vector<8x96xf32>
    %c0_1 = arith.constant 0 : index
    %c0_2 = arith.constant 0 : index
    %1 = vector.load %arg3[%c0_1, %c0_2] : memref<96x128xf32, #tpu.memory_space<vmem>>, vector<96x128xf32>
    %cst = arith.constant dense<0.000000e+00> : vector<8x128xf32>
    %2 = tpu.matmul %0, %1, %cst {dimension_numbers = #tpu.dot_dimension_numbers<[1], [0], [0], [1], [0, 0, 1, 1], [], []>} : vector<8x96xf32>, vector<96x128xf32>, vector<8x128xf32> -> vector<8x128xf32>
    %c0_3 = arith.constant 0 : index
    %c0_4 = arith.constant 0 : index
    %3 = vector.load %arg4[%c0_3, %c0_4] : memref<1x128xf32, #tpu.memory_space<vmem>>, vector<1x128xf32>
    %4 = vector.broadcast %3 : vector<1x128xf32> to vector<8x128xf32>
    %5 = arith.addf %2, %4 : vector<8x128xf32>
    %cst_5 = arith.constant 0.000000e+00 : f32
    %6 = vector.broadcast %cst_5 : f32 to vector<8x128xf32>
    %7 = arith.maximumf %5, %6 : vector<8x128xf32>
    %c0_6 = arith.constant 0 : index
    %c0_7 = arith.constant 0 : index
    %8 = vector.load %arg5[%c0_6, %c0_7] : memref<8x128xf32, #tpu.memory_space<vmem>>, vector<8x128xf32>
    tpu.vector_store %arg5[%c0_6, %c0_7], %7 {strides = array<i32>} : memref<8x128xf32, #tpu.memory_space<vmem>>, vector<8x128xf32>,
    return
  }
  func.func @transform_0(%arg0: i32, %arg1: i32) -> (i32, i32) {
    %c0_i32 = arith.constant 0 : i32
    %c0_i32_0 = arith.constant 0 : i32
    return %arg0, %c0_i32 : i32, i32
  }
  func.func @transform_1(%arg0: i32, %arg1: i32) -> (i32, i32) {
    %c0_i32 = arith.constant 0 : i32
    %c0_i32_0 = arith.constant 0 : i32
    return %c0_i32, %arg1 : i32, i32
  }
  func.func @transform_2(%arg0: i32, %arg1: i32) -> (i32, i32) {
    %c0_i32 = arith.constant 0 : i32
    %c0_i32_0 = arith.constant 0 : i32
    return %c0_i32, %arg1 : i32, i32
  }
  func.func @transform_3(%arg0: i32, %arg1: i32) -> (i32, i32) {
    %c0_i32 = arith.constant 0 : i32
    return %arg0, %arg1 : i32, i32
  }
}

</mosaic_0001>

<llo_original>
// kernel: tpu_custom_call.1
$region0: #{tpu_custom_call.1}
  #allocation0 [shape = 'u32[]', space=smem, size = 0x4, offset = 0x4, fixed_abs, tag = 'smem constant byte address 0x4 - core index']
  #allocation1 [shape = 'u32[144,128]{1,0:T(1,128)}', space=vmem, size = 0x12000, scoped, tag = 'internal scratch']
  %s0 = inlined_call_operand.hbm [shape: f32[8,96], index: 0, kind: input, shape index: {}]
  %s1 = inlined_call_operand.hbm [shape: f32[96,128], index: 1, kind: input, shape index: {}]
  %s2 = inlined_call_operand.vmem [shape: f32[1,128], index: 2, kind: input, shape index: {}]
  %s3 = inlined_call_operand.hbm [shape: f32[8,128], index: 3, kind: output, shape index: {}]
  %s4 = sld [smem:[#allocation0]]
  $region30: #{tpu_custom_call.1} parent=0
    _
  %s6 = ssub.s32 1, %s4
  %s7 = scalar_select 0, %s6, %s4
  $region1: #{tpu_custom_call.1} parent=0
    #allocation2 [shape = 'u8[4096]{0}', space=vmem, size = 0x1000, scoped, tag = 'input window, operand 0, single buffered']
    #allocation3 [shape = 's32[1]{0}', space=sflag, size = 0x4, scoped, tag = 'scoped memory for tpu_custom_call.1']
    #allocation4 [shape = 's32[1]{0}', space=sflag, size = 0x4, scoped, tag = 'scoped memory for tpu_custom_call.1']
    #allocation5 [shape = 'u8[49152]{0}', space=vmem, size = 0xc000, scoped, tag = 'input window, operand 1, single buffered']
    #allocation6 [shape = 's32[1]{0}', space=sflag, size = 0x4, scoped, tag = 'scoped memory for tpu_custom_call.1']
    #allocation7 [shape = 'u8[4096]{0}', space=vmem, size = 0x1000, scoped, tag = 'output window, operand 0, single buffered']
    %8 = vsyncpa [#allocation3], 0
    %9 = vsyncpa [#allocation6], 0
    %10 = vsyncpa [#allocation4], 0
    // Predicated region
    $region2: #{tpu_custom_call.1} parent=1 // pred_check
      _
    $region3: #{tpu_custom_call.1} parent=1 // pred_check_branch
      %12 = sbr.rel (0) target = $region5
    $region4: #{tpu_custom_call.1} parent=1 // pred_region
      %s14 = ssub.s32 128, 128
      %15 = vsyncadd [#allocation3], %s14
      %s17 = sshll.u32 [#allocation2], 4
      %s18 = int_to_ptr.vmem [resolvable:$true] %s17
      %20 = dma.hbm_to_vmem [thread:$0]  %s0, 128, %s18, [#allocation3]
    $region5: #{tpu_custom_call.1} parent=1 // pred_fallthru
      _
    // Predicated region
    $region6: #{tpu_custom_call.1} parent=1 // pred_check
      _
    $region7: #{tpu_custom_call.1} parent=1 // pred_check_branch
      %22 = sbr.rel (0) target = $region9
    $region8: #{tpu_custom_call.1} parent=1 // pred_region
      %s24 = ssub.s32 1536, 1536
      %25 = vsyncadd [#allocation6], %s24
      %s26 = sshll.u32 [#allocation5], 4
      %s27 = int_to_ptr.vmem [resolvable:$true] %s26
      %32 = dma.hbm_to_vmem [thread:$0]  %s1, 1536, %s27, [#allocation6], 128, 128, 8
    $region9: #{tpu_custom_call.1} parent=1 // pred_fallthru
      _
    // Predicated region
    $region10: #{tpu_custom_call.1} parent=1 // pred_check
      _
    $region11: #{tpu_custom_call.1} parent=1 // pred_check_branch
      %34 = sbr.rel (0) target = $region13
    $region12: #{tpu_custom_call.1} parent=1 // pred_region
      _
    $region13: #{tpu_custom_call.1} parent=1 // pred_fallthru
      _
    // Predicated region
    $region14: #{tpu_custom_call.1} parent=1 // pred_check
      _
    $region15: #{tpu_custom_call.1} parent=1 // pred_check_branch
      %36 = sbr.rel (0) target = $region17
    $region16: #{tpu_custom_call.1} parent=1 // pred_region
      %37 = dma.done [#allocation3], 128
    $region17: #{tpu_custom_call.1} parent=1 // pred_fallthru
      _
    // Predicated region
    $region18: #{tpu_custom_call.1} parent=1 // pred_check
      _
    $region19: #{tpu_custom_call.1} parent=1 // pred_check_branch
      %39 = sbr.rel (0) target = $region21
    $region20: #{tpu_custom_call.1} parent=1 // pred_region
      %40 = dma.done [#allocation6], 1536
    $region21: #{tpu_custom_call.1} parent=1 // pred_fallthru
      _
    %v41 = vld [vmem:[#allocation2] sm:$0xff]
    %v42 = vld [vmem:[#allocation5] sm:$0xff]
    %v43 = vld [vmem:[#allocation5 + $0x8] sm:$0xff]
    %v44 = vld [vmem:[#allocation5 + $0x10] sm:$0xff]
    %v45 = vld [vmem:[#allocation5 + $0x18] sm:$0xff]
    %v46 = vld [vmem:[#allocation5 + $0x20] sm:$0xff]
    %v47 = vld [vmem:[#allocation5 + $0x28] sm:$0xff]
    %v48 = vld [vmem:[#allocation5 + $0x30] sm:$0xff]
    %v49 = vld [vmem:[#allocation5 + $0x38] sm:$0xff]
    %v50 = vld [vmem:[#allocation5 + $0x40] sm:$0xff]
    %v51 = vld [vmem:[#allocation5 + $0x48] sm:$0xff]
    %v52 = vld [vmem:[#allocation5 + $0x50] sm:$0xff]
    %v53 = vld [vmem:[#allocation5 + $0x58] sm:$0xff]
    %v54 = vld [vmem:[%s2] sm:$0x1]
    %v56 = vlaneseq
    %v57 = vshrl.u32 %v56, 7
    %v58 = vsub.s32 0, %v57
    %v59 = vrot.slane %v54, %v58
    %vm61 = vcmask 785408
    %v63 = vsel %vm61, %v41, 0
    %65 = vmatprep.subr.mxu0 0.0
    %66 = vmatpush1.msra.mxu0 0.0
    %67 = vmatprep.subr.mxu0 0.0
    %68 = vmatpush1.msra.mxu0 0.0
    %69 = vmatprep.subr.mxu0 0.0
    %70 = vmatpush1.msra.mxu0 0.0
    %71 = vmatprep.subr.mxu0 0.0
    %72 = vmatpush1.msra.mxu0 0.0
    %73 = vmatprep.subr.mxu0 0.0
    %74 = vmatpush1.msra.mxu0 %v53
    %75 = vmatprep.subr.mxu0 0.0
    %76 = vmatpush1.msra.mxu0 %v52
    %77 = vmatprep.subr.mxu0 0.0
    %78 = vmatpush1.msra.mxu0 %v51
    %79 = vmatprep.subr.mxu0 0.0
    %80 = vmatpush1.msra.mxu0 %v50
    %81 = vmatprep.subr.mxu0 0.0
    %82 = vmatpush1.msra.mxu0 %v49
    %83 = vmatprep.subr.mxu0 0.0
    %84 = vmatpush1.msra.mxu0 %v48
    %85 = vmatprep.subr.mxu0 0.0
    %86 = vmatpush1.msra.mxu0 %v47
    %87 = vmatprep.subr.mxu0 0.0
    %88 = vmatpush1.msra.mxu0 %v46
    %89 = vmatprep.subr.mxu0 0.0
    %90 = vmatpush1.msra.mxu0 %v45
    %91 = vmatprep.subr.mxu0 0.0
    %92 = vmatpush1.msra.mxu0 %v44
    %93 = vmatprep.subr.mxu0 0.0
    %94 = vmatpush1.msra.mxu0 %v43
    %95 = vmatprep.subr.mxu0 0.0
    %96 = vmatpush1.msra.mxu0 %v42
    %97 = vmatprep.subr.mxu0 0.0
    %98 = vmatpush2.msra.mxu0 0.0
    %99 = vmatprep.subr.mxu0 0.0
    %100 = vmatpush2.msra.mxu0 0.0
    %101 = vmatprep.subr.mxu0 0.0
    %102 = vmatpush2.msra.mxu0 0.0
    %103 = vmatprep.subr.mxu0 0.0
    %104 = vmatpush2.msra.mxu0 0.0
    %105 = vmatprep.subr.mxu0 0.0
    %106 = vmatpush2.msra.mxu0 0.0
    %107 = vmatprep.subr.mxu0 0.0
    %108 = vmatpush2.msra.mxu0 0.0
    %109 = vmatprep.subr.mxu0 0.0
    %110 = vmatpush2.msra.mxu0 0.0
    %111 = vmatprep.subr.mxu0 0.0
    %112 = vmatpush2.msra.mxu0 0.0
    %113 = vmatprep.subr.mxu0 0.0
    %114 = vmatpush2.msra.mxu0 0.0
    %115 = vmatprep.subr.mxu0 0.0
    %116 = vmatpush2.msra.mxu0 0.0
    %117 = vmatprep.subr.mxu0 0.0
    %118 = vmatpush2.msra.mxu0 0.0
    %119 = vmatprep.subr.mxu0 0.0
    %120 = vmatpush2.msra.mxu0 0.0
    %121 = vmatprep.subr.mxu0 0.0
    %122 = vmatpush2.msra.mxu0 0.0
    %123 = vmatprep.subr.mxu0 0.0
    %124 = vmatpush2.msra.mxu0 0.0
    %125 = vmatprep.subr.mxu0 0.0
    %126 = vmatpush2.msra.mxu0 0.0
    %127 = vmatprep.subr.mxu0 0.0
    %128 = vmatpush2.msra.mxu0 0.0
    %129 = vmatprep.mubr.f32.mxu0 0.0
    %130 = vmatmul.mubr.f32.gmra.mxu0 %v63
    %v131 = vpop.f32.mrf.mxu0
    %v132 = vadd.f32 %v59, %v131
    %v133 = vpop.f32.mrf.mxu0
    %134 = vdwg.mxu0
    %v135 = vmax.f32 %v132, 0.0
    %136 = vst [vmem:[#allocation7] sm:$0xff] %v135
    // Predicated region
    $region22: #{tpu_custom_call.1} parent=1 // pred_check
      _
    $region23: #{tpu_custom_call.1} parent=1 // pred_check_branch
      %138 = sbr.rel (0) target = $region25
    $region24: #{tpu_custom_call.1} parent=1 // pred_region
      %s140 = ssub.s32 128, 128
      %141 = vsyncadd [#allocation4], %s140
      %s143 = sshll.u32 [#allocation7], 4
      %s144 = int_to_ptr.vmem [resolvable:$true] %s143
      %146 = dma.vmem_to_hbm [thread:$0]  %s144, 128, %s3, [#allocation4]
    $region25: #{tpu_custom_call.1} parent=1 // pred_fallthru
      _
    // Predicated region
    $region26: #{tpu_custom_call.1} parent=1 // pred_check
      _
    $region27: #{tpu_custom_call.1} parent=1 // pred_check_branch
      %148 = sbr.rel (0) target = $region29
    $region28: #{tpu_custom_call.1} parent=1 // pred_region
      %149 = dma.done [#allocation4], 128
    $region29: #{tpu_custom_call.1} parent=1 // pred_fallthru
      _
    %150 = vsyncpa [#allocation3], 1
    %151 = vsyncpa [#allocation6], 1
    %152 = vsyncpa [#allocation4], 1

</llo_original>
